<compile_context>
chip_gen: v6e
topology: v6e:2x2x1
jax: 0.10.0
libtpu: 0.0.40
codegen_flags: <defaults>
</compile_context>

<pallas_src>
import functools

import jax
import jax.numpy as jnp
import numpy as np
from jax.experimental import pallas as pl
from jax.experimental.pallas import tpu as pltpu


def _myloss_kernel(inv_sigma, lambd, beta, alpha,
                   out_ref, tcol_ref, trow_ref, w_ref, yp_ref, ncl_ref, cold_ref,
                   cnew_ref, loss_ref):
    x = out_ref[...]                     # (B, D) f32 features
    t_col = tcol_ref[...]                # (B, 1) i32 labels (column layout)
    t_row = trow_ref[...]                # (1, B) i32 labels (row / lane layout)
    w = w_ref[...]                       # (C, D) f32 classifier weight
    yp = yp_ref[...]                     # (B, C) f32 logits
    ncl = ncl_ref[...]                   # (1, C) f32  = 10 * n_c / n_0
    c_old = cold_ref[...]                # (C, D) f32 centers (EMA state)

    B, D = x.shape
    C = w.shape[0]
    f32 = jnp.float32

    # ---- one-hot labels built on the VPU (no wrapper-side one_hot op) -----------------
    oh = (jax.lax.broadcasted_iota(jnp.int32, (B, C), 1) == t_col).astype(f32)    # (B, C)
    ohT = (jax.lax.broadcasted_iota(jnp.int32, (C, B), 0) == t_row).astype(f32)   # (C, B)

    # ---- per-class stats: center EMA + max radius per class ---------------------------
    counts = jnp.sum(ohT, axis=1, keepdims=True)                        # (C, 1)
    sums = jnp.dot(ohT, x, preferred_element_type=f32)                  # (C, D)  MXU
    means = sums / jnp.maximum(counts, 1.0)
    c_new = jnp.where(counts > 0.0, 0.1 * c_old + 0.9 * means, c_old)   # (C, D)
    cnew_ref[...] = c_new                                               # in-place (aliased)

    per_c = jnp.dot(oh, c_new, preferred_element_type=f32)              # (B, D) centers[target]
    dvec = x - per_c
    dist = jnp.sqrt(jnp.sum(dvec * dvec, axis=1, keepdims=True))        # (B, 1)
    maxs = jnp.max(oh * dist, axis=0, keepdims=True)                    # (1, C) 0 if absent

    # ---- maxs normalisation by first positive radius, clamp at 1, ** alpha ------------
    cidx = jax.lax.broadcasted_iota(jnp.int32, (1, C), 1).astype(f32)
    pos = maxs > 0.0
    first_idx = jnp.min(jnp.where(pos, cidx, f32(C)), keepdims=True)              # (1, 1)
    maxx = jnp.sum(jnp.where(cidx == first_idx, maxs, 0.0), keepdims=True)        # (1, 1)
    maxx = jnp.where(maxx > 0.0, maxx, 1.0)     # guard: all radii zero (ref would Inf/NaN)
    maxs_n = jnp.minimum(maxs * pl.reciprocal(maxx, approx=True), 1.0)
    if alpha == 0.0:                            # torch: 0 ** 0 == 1
        maxs_pow = jnp.ones_like(maxs_n)
    else:                                       # x ** alpha, safe at x == 0
        maxs_pow = jnp.where(maxs_n > 0.0,
                             jnp.exp(f32(alpha) * jnp.log(jnp.maximum(maxs_n, 1e-30))),
                             0.0)

    # ---- pairwise squared distances via Gram matrix (MXU), no (B,B,D) intermediate ----
    g = jnp.einsum("id,kd->ik", x, x, preferred_element_type=f32)       # (B, B)
    sq = jnp.sum(x * x, axis=1, keepdims=True)                          # (B, 1)
    dis_mat = jnp.maximum(sq + jnp.transpose(sq) - 2.0 * g, 0.0)        # (B, B) >= 0

    # ---- judge mask: all_j (d[i,j] + d[k,j] >= d[j,k]) as a chunked running min -------
    # d is symmetric so d[j,k] == d[k,j]; never materialise the (B,B,B) tensor.
    jc = min(B, 128)
    min_acc = jnp.full((B, B), jnp.inf, dtype=f32)
    for j0 in range(0, B, jc):
        d_c = dis_mat[:, j0:j0 + jc]                                    # (B, <=jc)
        lhs = d_c[:, None, :] + d_c[None, :, :]                         # d[i,j] + d[k,j]
        rhs = d_c[None, :, :]                                           # d[j,k]  (symmetry)
        min_acc = jnp.minimum(min_acc, jnp.min(lhs - rhs, axis=-1))
    judge_mask = (min_acc >= 0.0).astype(f32)

    row_i = jax.lax.broadcasted_iota(jnp.int32, (B, B), 0)
    col_i = jax.lax.broadcasted_iota(jnp.int32, (B, B), 1)
    off_diag = (row_i != col_i).astype(f32)
    target_mask = (t_col != t_row).astype(f32)                          # (B, B) VPU compare
    mask = target_mask * judge_mask * off_diag

    # ---- pairwise / triplet-style term -------------------------------------------------
    inter_dis = jnp.exp(dis_mat * inv_sigma)                            # (B, B)
    cnt = jnp.maximum(jnp.sum(mask, keepdims=True), 1.0)   # guard: no valid pair -> term 0

    w_t = jnp.dot(oh, w, preferred_element_type=f32)                    # (B, D) weight[target]
    intra = jnp.exp(jnp.sum((x - w_t) ** 2, axis=1, keepdims=True) * inv_sigma)   # (B, 1)
    intra_row = jnp.transpose(intra)                                    # (1, B)

    lossdis = inter_dis - intra_row + lambd
    inter_new = jnp.maximum(mask * lossdis, 0.0)

    scale_col = jnp.sum(oh * ncl, axis=1, keepdims=True)                # (B, 1) ncl[target]
    inv_scale_row = pl.reciprocal(jnp.transpose(scale_col), approx=True)   # (1, B)
    pair_sum = jnp.sum(inter_new * inv_scale_row, keepdims=True)        # (1, 1)

    # ---- cross entropy on the scaled logits (y_pred *= maxs ** alpha) ------------------
    yps = yp * maxs_pow                                                 # (B, C)
    m = jnp.max(yps, axis=1, keepdims=True)
    lse = m + jnp.log(jnp.sum(jnp.exp(yps - m), axis=1, keepdims=True)) # (B, 1)
    picked = jnp.sum(oh * yps, axis=1, keepdims=True)                   # (B, 1)
    ce = jnp.sum(lse - picked, keepdims=True) * (1.0 / B)               # (1, 1) mean CE

    total = ce + beta * pair_sum * pl.reciprocal(cnt, approx=True)      # (1, 1)
    loss_ref[0, 0] = total[0, 0]                                        # scalar -> SMEM


def my_loss_forward(y_pred, target, weight, out, epoch, epochs,
                    nums_cls_list, centers, classes):
    B, C = y_pred.shape
    D = out.shape[1]
    assert C == classes and weight.shape == (C, D) and centers.shape == (C, D)

    # hyper-parameters are compile-time Python scalars (baked into the kernel)
    gamma = {10: 2, 100: 8, 200: 15, 365: 5}.get(classes, 2)
    sigma, lambd = {10: (-30.0, 0.5), 100: (-50.0, 0.5),
                    200: (-150.0, 0.3), 365: (-10.0, 0.5)}[classes]
    alpha = float((epoch / epochs) ** gamma)
    beta = float(max(1.0 - alpha, 0.7))
    # TODO(synk): classes > 10 keeps an EMA buffer self.maxR; not implemented (classes == 10 here).

    ncl = np.asarray(nums_cls_list, dtype=np.float32)
    ncl = (10.0 * ncl / ncl[0]).reshape(1, C)          # host-side constant, no runtime ops

    t32 = target.astype(jnp.int32)
    t_col = t32.reshape(B, 1)
    t_row = t32.reshape(1, B)

    vmem = pl.BlockSpec(memory_space=pltpu.MemorySpace.VMEM)
    smem = pl.BlockSpec(memory_space=pltpu.MemorySpace.SMEM)
    kernel = functools.partial(_myloss_kernel,
                               float(1.0 / sigma), float(lambd), beta, alpha)

    # TODO(synk): for large B, grid the pairwise section over row-tiles with
    #             dimension_semantics=("parallel",) (v7x dual-TC) and cast the MXU
    #             operands to bf16; unnecessary at B=8.
    centers_new, loss = pl.pallas_call(
        kernel,
        out_shape=(jax.ShapeDtypeStruct((C, D), jnp.float32),   # updated centers (aliased)
                   jax.ShapeDtypeStruct((1, 1), jnp.float32)),  # scalar loss (SMEM)
        in_specs=[vmem] * 7,
        out_specs=(vmem, smem),
        input_output_aliases={6: 0},   # centers updated in place (P8)
    )(out.astype(jnp.float32), t_col, t_row, weight.astype(jnp.float32),
      y_pred.astype(jnp.float32), jnp.asarray(ncl), centers.astype(jnp.float32))

    # TODO(synk): the reference's NaN debug prints / exit() and the unused
    #             y = log(softmax(y_pred) ** y_true) tensor are omitted.
    return loss[0, 0], centers_new


if __name__ == "__main__":
    key = jax.random.PRNGKey(0)
    B, C, D = 8, 10, 64            # batch, classes, feature dim (module fixes dim=64)
    k1, k2, k3, k4 = jax.random.split(key, 4)

    y_pred = jax.random.normal(k1, (B, C), dtype=jnp.float32)        # logits
    out = jax.random.normal(k2, (B, D), dtype=jnp.float32)           # features
    weight = 0.1 * jax.random.normal(k3, (C, D), dtype=jnp.float32)  # classifier weight
    target = jax.random.randint(k4, (B,), 0, C)                      # labels
    centers = jnp.zeros((C, D), dtype=jnp.float32)                   # module state (init zeros)
    nums_cls_list = [100, 90, 80, 70, 60, 50, 40, 30, 20, 10]        # long-tail class counts

    loss, new_centers = my_loss_forward(y_pred, target, weight, out,
                                        epoch=3, epochs=10,
                                        nums_cls_list=nums_cls_list,
                                        centers=centers, classes=C)
    jax.block_until_ready((loss, new_centers))
    assert loss.shape == () and jnp.isfinite(loss)
    assert new_centers.shape == (C, D)
    print("KERNEL_OK")
</pallas_src>

<mosaic_0001>
module attributes {stable_mosaic.version = 11 : i64} {
  func.func @_myloss_kernel(%arg0: memref<8x64xf32, #tpu.memory_space<vmem>>, %arg1: memref<8x1xi32, #tpu.memory_space<vmem>>, %arg2: memref<1x8xi32, #tpu.memory_space<vmem>>, %arg3: memref<10x64xf32, #tpu.memory_space<vmem>>, %arg4: memref<8x10xf32, #tpu.memory_space<vmem>>, %arg5: memref<1x10xf32, #tpu.memory_space<vmem>>, %arg6: memref<10x64xf32, #tpu.memory_space<vmem>>, %arg7: memref<10x64xf32, #tpu.memory_space<vmem>>, %arg8: memref<1x1xf32, #tpu.memory_space<smem>>) attributes {dimension_semantics = [], scalar_prefetch = 0 : i64, scratch_operands = 0 : i64, tpu.core_type = #tpu.core_type<tc>} {
    %c0 = arith.constant 0 : index
    %c0_0 = arith.constant 0 : index
    %0 = vector.load %arg0[%c0, %c0_0] : memref<8x64xf32, #tpu.memory_space<vmem>>, vector<8x64xf32>
    %c0_1 = arith.constant 0 : index
    %c0_2 = arith.constant 0 : index
    %1 = vector.load %arg1[%c0_1, %c0_2] : memref<8x1xi32, #tpu.memory_space<vmem>>, vector<8x1xi32>
    %c0_3 = arith.constant 0 : index
    %c0_4 = arith.constant 0 : index
    %2 = vector.load %arg2[%c0_3, %c0_4] : memref<1x8xi32, #tpu.memory_space<vmem>>, vector<1x8xi32>
    %c0_5 = arith.constant 0 : index
    %c0_6 = arith.constant 0 : index
    %3 = vector.load %arg3[%c0_5, %c0_6] : memref<10x64xf32, #tpu.memory_space<vmem>>, vector<10x64xf32>
    %c0_7 = arith.constant 0 : index
    %c0_8 = arith.constant 0 : index
    %4 = vector.load %arg4[%c0_7, %c0_8] : memref<8x10xf32, #tpu.memory_space<vmem>>, vector<8x10xf32>
    %c0_9 = arith.constant 0 : index
    %c0_10 = arith.constant 0 : index
    %5 = vector.load %arg5[%c0_9, %c0_10] : memref<1x10xf32, #tpu.memory_space<vmem>>, vector<1x10xf32>
    %c0_11 = arith.constant 0 : index
    %c0_12 = arith.constant 0 : index
    %6 = vector.load %arg6[%c0_11, %c0_12] : memref<10x64xf32, #tpu.memory_space<vmem>>, vector<10x64xf32>
    %7 = tpu.iota {dimensions = array<i32: 1>} : vector<8x10xi32>
    %8 = vector.broadcast %1 : vector<8x1xi32> to vector<8x10xi32>
    %9 = arith.cmpi eq, %7, %8 : vector<8x10xi32>
    %10 = arith.extui %9 : vector<8x10xi1> to vector<8x10xi32>
    %11 = arith.sitofp %10 : vector<8x10xi32> to vector<8x10xf32>
    %12 = tpu.iota {dimensions = array<i32: 0>} : vector<10x8xi32>
    %13 = vector.broadcast %2 : vector<1x8xi32> to vector<10x8xi32>
    %14 = arith.cmpi eq, %12, %13 : vector<10x8xi32>
    %15 = arith.extui %14 : vector<10x8xi1> to vector<10x8xi32>
    %16 = arith.sitofp %15 : vector<10x8xi32> to vector<10x8xf32>
    %cst = arith.constant dense<0.000000e+00> : vector<10xf32>
    %17 = vector.multi_reduction <add>, %16, %cst [1] : vector<10x8xf32> to vector<10xf32>
    %18 = vector.shape_cast %17 : vector<10xf32> to vector<10x1xf32>
    %cst_13 = arith.constant dense<0.000000e+00> : vector<10x64xf32>
    %19 = tpu.matmul %16, %0, %cst_13 {dimension_numbers = #tpu.dot_dimension_numbers<[1], [0], [0], [1], [0, 0, 1, 1], [], []>} : vector<10x8xf32>, vector<8x64xf32>, vector<10x64xf32> -> vector<10x64xf32>
    %cst_14 = arith.constant 1.000000e+00 : f32
    %20 = vector.broadcast %cst_14 : f32 to vector<10x1xf32>
    %21 = arith.maximumf %18, %20 : vector<10x1xf32>
    %22 = vector.broadcast %21 : vector<10x1xf32> to vector<10x64xf32>
    %23 = arith.divf %19, %22 : vector<10x64xf32>
    %cst_15 = arith.constant 0.000000e+00 : f32
    %24 = vector.broadcast %cst_15 : f32 to vector<10x1xf32>
    %25 = arith.cmpf ogt, %18, %24 : vector<10x1xf32>
    %cst_16 = arith.constant 1.000000e-01 : f32
    %26 = vector.broadcast %cst_16 : f32 to vector<10x64xf32>
    %27 = arith.mulf %26, %6 : vector<10x64xf32>
    %cst_17 = arith.constant 0.899999976 : f32
    %28 = vector.broadcast %cst_17 : f32 to vector<10x64xf32>
    %29 = arith.mulf %28, %23 : vector<10x64xf32>
    %30 = arith.addf %27, %29 : vector<10x64xf32>
    %31 = vector.shape_cast %25 : vector<10x1xi1> to vector<10x1xi1>
    %32 = vector.broadcast %31 : vector<10x1xi1> to vector<10x64xi1>
    %33 = arith.select %32, %30, %6 : vector<10x64xi1>, vector<10x64xf32>
    %c0_18 = arith.constant 0 : index
    %c0_19 = arith.constant 0 : index
    %34 = vector.load %arg7[%c0_18, %c0_19] : memref<10x64xf32, #tpu.memory_space<vmem>>, vector<10x64xf32>
    tpu.vector_store %arg7[%c0_18, %c0_19], %33 {strides = array<i32>} : memref<10x64xf32, #tpu.memory_space<vmem>>, vector<10x64xf32>,
    %cst_20 = arith.constant dense<0.000000e+00> : vector<8x64xf32>
    %35 = tpu.matmul %11, %33, %cst_20 {dimension_numbers = #tpu.dot_dimension_numbers<[1], [0], [0], [1], [0, 0, 1, 1], [], []>} : vector<8x10xf32>, vector<10x64xf32>, vector<8x64xf32> -> vector<8x64xf32>
    %36 = arith.subf %0, %35 : vector<8x64xf32>
    %37 = arith.mulf %36, %36 : vector<8x64xf32>
    %cst_21 = arith.constant dense<0.000000e+00> : vector<8xf32>
    %38 = vector.multi_reduction <add>, %37, %cst_21 [1] : vector<8x64xf32> to vector<8xf32>
    %39 = vector.shape_cast %38 : vector<8xf32> to vector<8x1xf32>
    %40 = math.sqrt %39 : vector<8x1xf32>
    %41 = vector.broadcast %40 : vector<8x1xf32> to vector<8x10xf32>
    %42 = arith.mulf %11, %41 : vector<8x10xf32>
    %cst_22 = arith.constant dense<0xFF800000> : vector<10xf32>
    %43 = vector.multi_reduction <maximumf>, %42, %cst_22 [0] : vector<8x10xf32> to vector<10xf32>
    %44 = vector.shape_cast %43 : vector<10xf32> to vector<1x10xf32>
    %45 = tpu.iota {dimensions = array<i32: 1>} : vector<1x10xi32>
    %46 = arith.sitofp %45 : vector<1x10xi32> to vector<1x10xf32>
    %cst_23 = arith.constant 0.000000e+00 : f32
    %47 = vector.broadcast %cst_23 : f32 to vector<1x10xf32>
    %48 = arith.cmpf ogt, %44, %47 : vector<1x10xf32>
    %cst_24 = arith.constant 1.000000e+01 : f32
    %49 = vector.broadcast %cst_24 : f32 to vector<1x10xf32>
    %50 = arith.select %48, %46, %49 : vector<1x10xi1>, vector<1x10xf32>
    %51 = vector.shape_cast %50 : vector<1x10xf32> to vector<1x1x10xf32>
    %cst_25 = arith.constant dense<0x7F800000> : vector<1xf32>
    %52 = vector.multi_reduction <minimumf>, %51, %cst_25 [1, 2] : vector<1x1x10xf32> to vector<1xf32>
    %53 = vector.shape_cast %52 : vector<1xf32> to vector<1x1x1xf32>
    %54 = vector.extract %53[0, 0, 0] : f32 from vector<1x1x1xf32>
    %55 = vector.broadcast %54 : f32 to vector<1x1xf32>
    %56 = vector.broadcast %55 : vector<1x1xf32> to vector<1x10xf32>
    %57 = arith.cmpf oeq, %46, %56 : vector<1x10xf32>
    %cst_26 = arith.constant 0.000000e+00 : f32
    %58 = vector.broadcast %cst_26 : f32 to vector<1x10xf32>
    %59 = arith.select %57, %44, %58 : vector<1x10xi1>, vector<1x10xf32>
    %60 = vector.shape_cast %59 : vector<1x10xf32> to vector<1x1x10xf32>
    %cst_27 = arith.constant dense<0.000000e+00> : vector<1xf32>
    %61 = vector.multi_reduction <add>, %60, %cst_27 [1, 2] : vector<1x1x10xf32> to vector<1xf32>
    %62 = vector.shape_cast %61 : vector<1xf32> to vector<1x1x1xf32>
    %63 = vector.extract %62[0, 0, 0] : f32 from vector<1x1x1xf32>
    %64 = vector.broadcast %63 : f32 to vector<1x1xf32>
    %cst_28 = arith.constant 0.000000e+00 : f32
    %65 = vector.broadcast %cst_28 : f32 to vector<1x1xf32>
    %66 = arith.cmpf ogt, %64, %65 : vector<1x1xf32>
    %cst_29 = arith.constant 1.000000e+00 : f32
    %67 = vector.broadcast %cst_29 : f32 to vector<1x1xf32>
    %68 = arith.select %66, %64, %67 : vector<1x1xi1>, vector<1x1xf32>
    %69 = tpu.reciprocal %68 {approx = true} : vector<1x1xf32> -> vector<1x1xf32>
    %70 = vector.broadcast %69 : vector<1x1xf32> to vector<1x10xf32>
    %71 = arith.mulf %44, %70 : vector<1x10xf32>
    %cst_30 = arith.constant 1.000000e+00 : f32
    %72 = vector.broadcast %cst_30 : f32 to vector<1x10xf32>
    %73 = arith.minimumf %71, %72 : vector<1x10xf32>
    %cst_31 = arith.constant 0.000000e+00 : f32
    %74 = vector.broadcast %cst_31 : f32 to vector<1x10xf32>
    %75 = arith.cmpf ogt, %73, %74 : vector<1x10xf32>
    %cst_32 = arith.constant 1.000000e-30 : f32
    %76 = vector.broadcast %cst_32 : f32 to vector<1x10xf32>
    %77 = arith.maximumf %73, %76 : vector<1x10xf32>
    %78 = math.log %77 : vector<1x10xf32>
    %cst_33 = arith.constant 9.000000e-02 : f32
    %79 = vector.broadcast %cst_33 : f32 to vector<1x10xf32>
    %80 = arith.mulf %79, %78 : vector<1x10xf32>
    %81 = math.exp %80 : vector<1x10xf32>
    %cst_34 = arith.constant 0.000000e+00 : f32
    %82 = vector.broadcast %cst_34 : f32 to vector<1x10xf32>
    %83 = arith.select %75, %81, %82 : vector<1x10xi1>, vector<1x10xf32>
    "tpu.trace_start"() <{level = 10 : i32, message = "id,kd->ik"}> : () -> ()
    %cst_35 = arith.constant dense<0.000000e+00> : vector<8x8xf32>
    %84 = tpu.matmul %0, %0, %cst_35 {dimension_numbers = #tpu.dot_dimension_numbers<[1], [1], [0], [0], [0, 0, 1, 0], [], []>} : vector<8x64xf32>, vector<8x64xf32>, vector<8x8xf32> -> vector<8x8xf32>
    "tpu.trace_stop"() : () -> ()
    %85 = arith.mulf %0, %0 : vector<8x64xf32>
    %cst_36 = arith.constant dense<0.000000e+00> : vector<8xf32>
    %86 = vector.multi_reduction <add>, %85, %cst_36 [1] : vector<8x64xf32> to vector<8xf32>
    %87 = vector.shape_cast %86 : vector<8xf32> to vector<8x1xf32>
    %88 = tpu.transpose %87, [1, 0] : vector<8x1xf32> -> vector<1x8xf32>
    %89 = vector.broadcast %87 : vector<8x1xf32> to vector<8x8xf32>
    %90 = vector.broadcast %88 : vector<1x8xf32> to vector<8x8xf32>
    %91 = arith.addf %89, %90 : vector<8x8xf32>
    %cst_37 = arith.constant 2.000000e+00 : f32
    %92 = vector.broadcast %cst_37 : f32 to vector<8x8xf32>
    %93 = arith.mulf %92, %84 : vector<8x8xf32>
    %94 = arith.subf %91, %93 : vector<8x8xf32>
    %cst_38 = arith.constant 0.000000e+00 : f32
    %95 = vector.broadcast %cst_38 : f32 to vector<8x8xf32>
    %96 = arith.maximumf %94, %95 : vector<8x8xf32>
    %cst_39 = arith.constant 0x7F800000 : f32
    %97 = vector.broadcast %cst_39 : f32 to vector<8x8xf32>
    %98 = vector.shape_cast %96 : vector<8x8xf32> to vector<8x1x8xf32>
    %99 = vector.shape_cast %96 : vector<8x8xf32> to vector<1x8x8xf32>
    %100 = vector.broadcast %98 : vector<8x1x8xf32> to vector<8x8x8xf32>
    %101 = vector.broadcast %99 : vector<1x8x8xf32> to vector<8x8x8xf32>
    %102 = arith.addf %100, %101 : vector<8x8x8xf32>
    %103 = vector.shape_cast %96 : vector<8x8xf32> to vector<1x8x8xf32>
    %104 = vector.broadcast %103 : vector<1x8x8xf32> to vector<8x8x8xf32>
    %105 = arith.subf %102, %104 : vector<8x8x8xf32>
    %cst_40 = arith.constant dense<0x7F800000> : vector<8x8xf32>
    %106 = vector.multi_reduction <minimumf>, %105, %cst_40 [2] : vector<8x8x8xf32> to vector<8x8xf32>
    %107 = arith.minimumf %97, %106 : vector<8x8xf32>
    %cst_41 = arith.constant 0.000000e+00 : f32
    %108 = vector.broadcast %cst_41 : f32 to vector<8x8xf32>
    %109 = arith.cmpf oge, %107, %108 : vector<8x8xf32>
    %110 = arith.extui %109 : vector<8x8xi1> to vector<8x8xi32>
    %111 = arith.sitofp %110 : vector<8x8xi32> to vector<8x8xf32>
    %112 = tpu.iota {dimensions = array<i32: 0>} : vector<8x8xi32>
    %113 = tpu.iota {dimensions = array<i32: 1>} : vector<8x8xi32>
    %114 = arith.cmpi ne, %112, %113 : vector<8x8xi32>
    %115 = arith.extui %114 : vector<8x8xi1> to vector<8x8xi32>
    %116 = arith.sitofp %115 : vector<8x8xi32> to vector<8x8xf32>
    %117 = vector.broadcast %1 : vector<8x1xi32> to vector<8x8xi32>
    %118 = vector.broadcast %2 : vector<1x8xi32> to vector<8x8xi32>
    %119 = arith.cmpi ne, %117, %118 : vector<8x8xi32>
    %120 = arith.extui %119 : vector<8x8xi1> to vector<8x8xi32>
    %121 = arith.sitofp %120 : vector<8x8xi32> to vector<8x8xf32>
    %122 = arith.mulf %121, %111 : vector<8x8xf32>
    %123 = arith.mulf %122, %116 : vector<8x8xf32>
    %cst_42 = arith.constant -0.0333333351 : f32
    %124 = vector.broadcast %cst_42 : f32 to vector<8x8xf32>
    %125 = arith.mulf %96, %124 : vector<8x8xf32>
    %126 = math.exp %125 : vector<8x8xf32>
    %127 = vector.shape_cast %123 : vector<8x8xf32> to vector<1x8x8xf32>
    %cst_43 = arith.constant dense<0.000000e+00> : vector<1xf32>
    %128 = vector.multi_reduction <add>, %127, %cst_43 [1, 2] : vector<1x8x8xf32> to vector<1xf32>
    %129 = vector.shape_cast %128 : vector<1xf32> to vector<1x1x1xf32>
    %130 = vector.extract %129[0, 0, 0] : f32 from vector<1x1x1xf32>
    %131 = vector.broadcast %130 : f32 to vector<1x1xf32>
    %cst_44 = arith.constant 1.000000e+00 : f32
    %132 = vector.broadcast %cst_44 : f32 to vector<1x1xf32>
    %133 = arith.maximumf %131, %132 : vector<1x1xf32>
    %cst_45 = arith.constant dense<0.000000e+00> : vector<8x64xf32>
    %134 = tpu.matmul %11, %3, %cst_45 {dimension_numbers = #tpu.dot_dimension_numbers<[1], [0], [0], [1], [0, 0, 1, 1], [], []>} : vector<8x10xf32>, vector<10x64xf32>, vector<8x64xf32> -> vector<8x64xf32>
    %135 = arith.subf %0, %134 : vector<8x64xf32>
    %136 = arith.mulf %135, %135 : vector<8x64xf32>
    %cst_46 = arith.constant dense<0.000000e+00> : vector<8xf32>
    %137 = vector.multi_reduction <add>, %136, %cst_46 [1] : vector<8x64xf32> to vector<8xf32>
    %138 = vector.shape_cast %137 : vector<8xf32> to vector<8x1xf32>
    %cst_47 = arith.constant -0.0333333351 : f32
    %139 = vector.broadcast %cst_47 : f32 to vector<8x1xf32>
    %140 = arith.mulf %138, %139 : vector<8x1xf32>
    %141 = math.exp %140 : vector<8x1xf32>
    %142 = tpu.transpose %141, [1, 0] : vector<8x1xf32> -> vector<1x8xf32>
    %143 = vector.broadcast %142 : vector<1x8xf32> to vector<8x8xf32>
    %144 = arith.subf %126, %143 : vector<8x8xf32>
    %cst_48 = arith.constant 5.000000e-01 : f32
    %145 = vector.broadcast %cst_48 : f32 to vector<8x8xf32>
    %146 = arith.addf %144, %145 : vector<8x8xf32>
    %147 = arith.mulf %123, %146 : vector<8x8xf32>
    %cst_49 = arith.constant 0.000000e+00 : f32
    %148 = vector.broadcast %cst_49 : f32 to vector<8x8xf32>
    %149 = arith.maximumf %147, %148 : vector<8x8xf32>
    %150 = vector.broadcast %5 : vector<1x10xf32> to vector<8x10xf32>
    %151 = arith.mulf %11, %150 : vector<8x10xf32>
    %cst_50 = arith.constant dense<0.000000e+00> : vector<8xf32>
    %152 = vector.multi_reduction <add>, %151, %cst_50 [1] : vector<8x10xf32> to vector<8xf32>
    %153 = vector.shape_cast %152 : vector<8xf32> to vector<8x1xf32>
    %154 = tpu.transpose %153, [1, 0] : vector<8x1xf32> -> vector<1x8xf32>
    %155 = tpu.reciprocal %154 {approx = true} : vector<1x8xf32> -> vector<1x8xf32>
    %156 = vector.broadcast %155 : vector<1x8xf32> to vector<8x8xf32>
    %157 = arith.mulf %149, %156 : vector<8x8xf32>
    %158 = vector.shape_cast %157 : vector<8x8xf32> to vector<1x8x8xf32>
    %cst_51 = arith.constant dense<0.000000e+00> : vector<1xf32>
    %159 = vector.multi_reduction <add>, %158, %cst_51 [1, 2] : vector<1x8x8xf32> to vector<1xf32>
    %160 = vector.shape_cast %159 : vector<1xf32> to vector<1x1x1xf32>
    %161 = vector.extract %160[0, 0, 0] : f32 from vector<1x1x1xf32>
    %162 = vector.broadcast %161 : f32 to vector<1x1xf32>
    %163 = vector.broadcast %83 : vector<1x10xf32> to vector<8x10xf32>
    %164 = arith.mulf %4, %163 : vector<8x10xf32>
    %cst_52 = arith.constant dense<0xFF800000> : vector<8xf32>
    %165 = vector.multi_reduction <maximumf>, %164, %cst_52 [1] : vector<8x10xf32> to vector<8xf32>
    %166 = vector.shape_cast %165 : vector<8xf32> to vector<8x1xf32>
    %167 = vector.broadcast %166 : vector<8x1xf32> to vector<8x10xf32>
    %168 = arith.subf %164, %167 : vector<8x10xf32>
    %169 = math.exp %168 : vector<8x10xf32>
    %cst_53 = arith.constant dense<0.000000e+00> : vector<8xf32>
    %170 = vector.multi_reduction <add>, %169, %cst_53 [1] : vector<8x10xf32> to vector<8xf32>
    %171 = vector.shape_cast %170 : vector<8xf32> to vector<8x1xf32>
    %172 = math.log %171 : vector<8x1xf32>
    %173 = arith.addf %166, %172 : vector<8x1xf32>
    %174 = arith.mulf %11, %164 : vector<8x10xf32>
    %cst_54 = arith.constant dense<0.000000e+00> : vector<8xf32>
    %175 = vector.multi_reduction <add>, %174, %cst_54 [1] : vector<8x10xf32> to vector<8xf32>
    %176 = vector.shape_cast %175 : vector<8xf32> to vector<8x1xf32>
    %177 = arith.subf %173, %176 : vector<8x1xf32>
    %178 = vector.shape_cast %177 : vector<8x1xf32> to vector<1x8x1xf32>
    %cst_55 = arith.constant dense<0.000000e+00> : vector<1xf32>
    %179 = vector.multi_reduction <add>, %178, %cst_55 [1, 2] : vector<1x8x1xf32> to vector<1xf32>
    %180 = vector.shape_cast %179 : vector<1xf32> to vector<1x1x1xf32>
    %181 = vector.extract %180[0, 0, 0] : f32 from vector<1x1x1xf32>
    %182 = vector.broadcast %181 : f32 to vector<1x1xf32>
    %cst_56 = arith.constant 1.250000e-01 : f32
    %183 = vector.broadcast %cst_56 : f32 to vector<1x1xf32>
    %184 = arith.mulf %182, %183 : vector<1x1xf32>
    %cst_57 = arith.constant 9.100000e-01 : f32
    %185 = vector.broadcast %cst_57 : f32 to vector<1x1xf32>
    %186 = arith.mulf %185, %162 : vector<1x1xf32>
    %187 = tpu.reciprocal %133 {approx = true} : vector<1x1xf32> -> vector<1x1xf32>
    %188 = arith.mulf %186, %187 : vector<1x1xf32>
    %189 = arith.addf %184, %188 : vector<1x1xf32>
    %190 = vector.extract %189[0, 0] : f32 from vector<1x1xf32>
    %c0_58 = arith.constant 0 : index
    %c0_59 = arith.constant 0 : index
    %191 = memref.load %arg8[%c0_58, %c0_59] : memref<1x1xf32, #tpu.memory_space<smem>>
    memref.store %190, %arg8[%c0_58, %c0_59] : memref<1x1xf32, #tpu.memory_space<smem>>
    return
  }
}

</mosaic_0001>

<llo_original>
// kernel: tpu_custom_call.1
$region0: #{tpu_custom_call.1}
  #allocation0 [shape = 'u32[]', space=smem, size = 0x4, offset = 0x4, fixed_abs, tag = 'smem constant byte address 0x4 - core index']
  #allocation1 [shape = 'u32[144,128]{1,0:T(1,128)}', space=vmem, size = 0x12000, scoped, tag = 'internal scratch']
  %s0 = inlined_call_operand.vmem [shape: f32[8,64], index: 0, kind: input, shape index: {}]
  %s1 = inlined_call_operand.vmem [shape: s32[8,1], index: 1, kind: input, shape index: {}]
  %s2 = inlined_call_operand.vmem [shape: s32[1,8], index: 2, kind: input, shape index: {}]
  %s3 = inlined_call_operand.vmem [shape: f32[10,64], index: 3, kind: input, shape index: {}]
  %s4 = inlined_call_operand.vmem [shape: f32[8,10], index: 4, kind: input, shape index: {}]
  %s5 = inlined_call_operand.vmem [shape: f32[1,10], index: 5, kind: input, shape index: {}]
  %s6 = inlined_call_operand.hbm [shape: f32[10,64], index: 6, kind: input, shape index: {}, may-alias: {6,7}]
  %s7 = inlined_call_operand.hbm [shape: f32[10,64], index: 7, kind: output, shape index: {0}, may-alias: {6,7}]
  %s8 = inlined_call_operand.hbm [shape: f32[1,1], index: 8, kind: output, shape index: {1}]
  %9 = xla_tuple %s7, %s8
  %s10 = sld [smem:[#allocation0]]
  $region50: #{tpu_custom_call.1} parent=0
    _
  %s12 = ssub.s32 1, %s10
  %s13 = scalar_select 0, %s12, %s10
  $region1: #{tpu_custom_call.1} parent=0
    #allocation2 [shape = 'u8[8192]{0}', space=vmem, size = 0x2000, scoped, tag = 'input window, operand 6, single buffered']
    #allocation3 [shape = 's32[1]{0}', space=sflag, size = 0x4, scoped, tag = 'scoped memory for tpu_custom_call.1']
    #allocation4 [shape = 's32[1]{0}', space=sflag, size = 0x4, scoped, tag = 'scoped memory for tpu_custom_call.1']
    #allocation5 [shape = 's32[1]{0}', space=sflag, size = 0x4, scoped, tag = 'scoped memory for tpu_custom_call.1']
    #allocation6 [shape = 'u8[8192]{0}', space=vmem, size = 0x2000, scoped, tag = 'output window, operand 0, single buffered']
    #allocation7 [shape = 'u8[512]{0}', space=smem, size = 0x200, scoped, tag = 'output window, operand 1, single buffered']
    %14 = vsyncpa [#allocation3], 0
    %15 = vsyncpa [#allocation4], 0
    %16 = vsyncpa [#allocation5], 0
    // Predicated region
    $region2: #{tpu_custom_call.1} parent=1 // pred_check
      _
    $region3: #{tpu_custom_call.1} parent=1 // pred_check_branch
      %18 = sbr.rel (0) target = $region5
    $region4: #{tpu_custom_call.1} parent=1 // pred_region
      _
    $region5: #{tpu_custom_call.1} parent=1 // pred_fallthru
      _
    // Predicated region
    $region6: #{tpu_custom_call.1} parent=1 // pred_check
      _
    $region7: #{tpu_custom_call.1} parent=1 // pred_check_branch
      %20 = sbr.rel (0) target = $region9
    $region8: #{tpu_custom_call.1} parent=1 // pred_region
      _
    $region9: #{tpu_custom_call.1} parent=1 // pred_fallthru
      _
    // Predicated region
    $region10: #{tpu_custom_call.1} parent=1 // pred_check
      _
    $region11: #{tpu_custom_call.1} parent=1 // pred_check_branch
      %22 = sbr.rel (0) target = $region13
    $region12: #{tpu_custom_call.1} parent=1 // pred_region
      _
    $region13: #{tpu_custom_call.1} parent=1 // pred_fallthru
      _
    // Predicated region
    $region14: #{tpu_custom_call.1} parent=1 // pred_check
      _
    $region15: #{tpu_custom_call.1} parent=1 // pred_check_branch
      %24 = sbr.rel (0) target = $region17
    $region16: #{tpu_custom_call.1} parent=1 // pred_region
      _
    $region17: #{tpu_custom_call.1} parent=1 // pred_fallthru
      _
    // Predicated region
    $region18: #{tpu_custom_call.1} parent=1 // pred_check
      _
    $region19: #{tpu_custom_call.1} parent=1 // pred_check_branch
      %26 = sbr.rel (0) target = $region21
    $region20: #{tpu_custom_call.1} parent=1 // pred_region
      _
    $region21: #{tpu_custom_call.1} parent=1 // pred_fallthru
      _
    // Predicated region
    $region22: #{tpu_custom_call.1} parent=1 // pred_check
      _
    $region23: #{tpu_custom_call.1} parent=1 // pred_check_branch
      %28 = sbr.rel (0) target = $region25
    $region24: #{tpu_custom_call.1} parent=1 // pred_region
      _
    $region25: #{tpu_custom_call.1} parent=1 // pred_fallthru
      _
    // Predicated region
    $region26: #{tpu_custom_call.1} parent=1 // pred_check
      _
    $region27: #{tpu_custom_call.1} parent=1 // pred_check_branch
      %30 = sbr.rel (0) target = $region29
    $region28: #{tpu_custom_call.1} parent=1 // pred_region
      %s32 = ssub.s32 256, 256
      %33 = vsyncadd [#allocation3], %s32
      %s34 = sshll.u32 [#allocation2], 4
      %s35 = int_to_ptr.vmem [resolvable:$true] %s34
      %40 = dma.hbm_to_vmem [thread:$0]  %s6, 256, %s35, [#allocation3], 128, 128, 8
    $region29: #{tpu_custom_call.1} parent=1 // pred_fallthru
      _
    // Predicated region
    $region30: #{tpu_custom_call.1} parent=1 // pred_check
      _
    $region31: #{tpu_custom_call.1} parent=1 // pred_check_branch
      %42 = sbr.rel (0) target = $region33
    $region32: #{tpu_custom_call.1} parent=1 // pred_region
      %43 = dma.done [#allocation3], 256
    $region33: #{tpu_custom_call.1} parent=1 // pred_fallthru
      _
    %v44 = vld [vmem:[%s0] sm:$0xff]
    %v45 = vld [vmem:[%s1] sm:$0xff]
    %v46 = vld [vmem:[%s2] sm:$0x1]
    %v47 = vld [vmem:[%s3] sm:$0xff]
    %v48 = vld [vmem:[%s3 + $0x8] sm:$0x3]
    %v49 = vld [vmem:[%s4] sm:$0xff]
    %v50 = vld [vmem:[%s5] sm:$0x1]
    %v51 = vld [vmem:[#allocation2] sm:$0xff]
    %v52 = vld [vmem:[#allocation2 + $0x8] sm:$0x3]
    %v53 = vlaneseq
    %v54 = vand.u32 %v53, 127
    %55 = vset.pattern.permute.xlu0 0
    %56 = vperm.xlu0 %55, %v45
    %v57 = vpop.permute.xlu0 %56
    %vm58 = vcmp.eq.s32.totalorder %v54, %v57
    %v59 = vsel %vm58, 1, 0
    %v60 = vcvt.s32.f32 %v59
    %v61 = vlaneseq
    %v62 = vshrl.u32 %v61, 7
    %v63 = vadd.s32 %v62, 8
    %v64 = vlaneseq
    %v65 = vshrl.u32 %v64, 7
    %v66 = vsub.s32 0, %v65
    %v67 = vrot.slane %v46, %v66
    %vm68 = vcmp.eq.s32.totalorder %v62, %v67
    %vm69 = vcmp.eq.s32.totalorder %v63, %v67
    %v70 = vsel %vm68, 1, 0
    %v71 = vsel %vm69, 1, 0
    %v72 = vcvt.s32.f32 %v70
    %v73 = vcvt.s32.f32 %v71
    %vm74 = vcmask 64512
    %v75 = vsel %vm74, %v72, 0.0
    %76 = vadd.xlane.f32.xlu0 %v75
    %v77 = vpop.xlane.xlu0 %76
    %vm78 = vcmask 58368
    %v79 = vsel %vm78, %v73, 0.0
    %80 = vadd.xlane.f32.xlu0 %v79
    %v81 = vpop.xlane.xlu0 %80
    %v83 = vsel %vm74, %v72, 0
    %v86 = vsel %vm74, %v73, 0
    %88 = vmatprep.subr.mxu0 0.0
    %89 = vmatpush1.msra.mxu0 0.0
    %90 = vmatprep.subr.mxu0 0.0
    %91 = vmatpush1.msra.mxu0 0.0
    %92 = vmatprep.subr.mxu0 0.0
    %93 = vmatpush1.msra.mxu0 0.0
    %94 = vmatprep.subr.mxu0 0.0
    %95 = vmatpush1.msra.mxu0 0.0
    %96 = vmatprep.subr.mxu0 0.0
    %97 = vmatpush1.msra.mxu0 0.0
    %98 = vmatprep.subr.mxu0 0.0
    %99 = vmatpush1.msra.mxu0 0.0
    %100 = vmatprep.subr.mxu0 0.0
    %101 = vmatpush1.msra.mxu0 0.0
    %102 = vmatprep.subr.mxu0 0.0
    %103 = vmatpush1.msra.mxu0 0.0
    %104 = vmatprep.subr.mxu0 0.0
    %105 = vmatpush1.msra.mxu0 0.0
    %106 = vmatprep.subr.mxu0 0.0
    %107 = vmatpush1.msra.mxu0 0.0
    %108 = vmatprep.subr.mxu0 0.0
    %109 = vmatpush1.msra.mxu0 0.0
    %110 = vmatprep.subr.mxu0 0.0
    %111 = vmatpush1.msra.mxu0 0.0
    %112 = vmatprep.subr.mxu0 0.0
    %113 = vmatpush1.msra.mxu0 0.0
    %114 = vmatprep.subr.mxu0 0.0
    %115 = vmatpush1.msra.mxu0 0.0
    %116 = vmatprep.subr.mxu0 0.0
    %117 = vmatpush1.msra.mxu0 0.0
    %118 = vmatprep.subr.mxu0 0.0
    %119 = vmatpush1.msra.mxu0 %v44
    %120 = vmatprep.subr.mxu0 0.0
    %121 = vmatpush2.msra.mxu0 0.0
    %122 = vmatprep.subr.mxu0 0.0
    %123 = vmatpush2.msra.mxu0 0.0
    %124 = vmatprep.subr.mxu0 0.0
    %125 = vmatpush2.msra.mxu0 0.0
    %126 = vmatprep.subr.mxu0 0.0
    %127 = vmatpush2.msra.mxu0 0.0
    %128 = vmatprep.subr.mxu0 0.0
    %129 = vmatpush2.msra.mxu0 0.0
    %130 = vmatprep.subr.mxu0 0.0
    %131 = vmatpush2.msra.mxu0 0.0
    %132 = vmatprep.subr.mxu0 0.0
    %133 = vmatpush2.msra.mxu0 0.0
    %134 = vmatprep.subr.mxu0 0.0
    %135 = vmatpush2.msra.mxu0 0.0
    %136 = vmatprep.subr.mxu0 0.0
    %137 = vmatpush2.msra.mxu0 0.0
    %138 = vmatprep.subr.mxu0 0.0
    %139 = vmatpush2.msra.mxu0 0.0
    %140 = vmatprep.subr.mxu0 0.0
    %141 = vmatpush2.msra.mxu0 0.0
    %142 = vmatprep.subr.mxu0 0.0
    %143 = vmatpush2.msra.mxu0 0.0
    %144 = vmatprep.subr.mxu0 0.0
    %145 = vmatpush2.msra.mxu0 0.0
    %146 = vmatprep.subr.mxu0 0.0
    %147 = vmatpush2.msra.mxu0 0.0
    %148 = vmatprep.subr.mxu0 0.0
    %149 = vmatpush2.msra.mxu0 0.0
    %150 = vmatprep.subr.mxu0 0.0
    %151 = vmatpush2.msra.mxu0 0.0
    %152 = vmatprep.mubr.f32.mxu0 0.0
    %153 = vmatmul.mubr.f32.gmra.mxu0 %v83
    %v154 = vpop.f32.mrf.mxu0
    %v155 = vadd.f32 0.0, %v154
    %v156 = vpop.f32.mrf.mxu0
    %157 = vmatprep.mubr.f32.mxu0 0.0
    %158 = vmatmul.mubr.f32.gmra.mxu0 %v86
    %v159 = vpop.f32.mrf.mxu0
    %v160 = vadd.f32 0.0, %v159
    %v161 = vpop.f32.mrf.mxu0
    %162 = vdwg.mxu0
    %v163 = vmax.f32 %v77, 1.0
    %v164 = vmax.f32 %v81, 1.0
    %v165 = vrcp.pop %v163
    %v166 = vmul.f32 %v155, %v165
    %v167 = vrcp.pop %v164
    %v168 = vmul.f32 %v160, %v167
    %vm169 = vcmp.gt.f32.partialorder %v77, 0.0
    %vm170 = vcmp.gt.f32.partialorder %v81, 0.0
    %v171 = vmul.f32 %v51, 0.1
    %v172 = vmul.f32 %v52, 0.1
    %v173 = vmul.f32 %v166, 0.9
    %v174 = vmul.f32 %v168, 0.9
    %v175 = vadd.f32 %v171, %v173
    %v176 = vadd.f32 %v172, %v174
    %v177 = vsel %vm169, 1, 0
    %v178 = vsel %vm170, 1, 0
    %vm179 = vcmp.eq.s32.totalorder %v177, 1
    %vm180 = vcmp.eq.s32.totalorder %v178, 1
    %v181 = vsel %vm179, %v175, %v51
    %v182 = vsel %vm180, %v176, %v52
    %vm183 = vcmask 523264
    %184 = vst.msk [vmem:[#allocation6] sm:$0xff] %vm183, %v181
    %vm185 = vcmask 517120
    %186 = vst.msk [vmem:[#allocation6 + $0x8] sm:$0x3] %vm185, %v182
    %vm187 = vcmask 80896
    %v189 = vsel %vm187, %v60, 0
    %vm191 = vcmask 1041408
    %v193 = vsel %vm191, %v182, 0
    %195 = vmatprep.subr.mxu0 0.0
    %196 = vmatpush1.msra.mxu0 0.0
    %197 = vmatprep.subr.mxu0 0.0
    %198 = vmatpush1.msra.mxu0 0.0
    %199 = vmatprep.subr.mxu0 0.0
    %200 = vmatpush1.msra.mxu0 0.0
    %201 = vmatprep.subr.mxu0 0.0
    %202 = vmatpush1.msra.mxu0 0.0
    %203 = vmatprep.subr.mxu0 0.0
    %204 = vmatpush1.msra.mxu0 0.0
    %205 = vmatprep.subr.mxu0 0.0
    %206 = vmatpush1.msra.mxu0 0.0
    %207 = vmatprep.subr.mxu0 0.0
    %208 = vmatpush1.msra.mxu0 0.0
    %209 = vmatprep.subr.mxu0 0.0
    %210 = vmatpush1.msra.mxu0 0.0
    %211 = vmatprep.subr.mxu0 0.0
    %212 = vmatpush1.msra.mxu0 0.0
    %213 = vmatprep.subr.mxu0 0.0
    %214 = vmatpush1.msra.mxu0 0.0
    %215 = vmatprep.subr.mxu0 0.0
    %216 = vmatpush1.msra.mxu0 0.0
    %217 = vmatprep.subr.mxu0 0.0
    %218 = vmatpush1.msra.mxu0 0.0
    %219 = vmatprep.subr.mxu0 0.0
    %220 = vmatpush1.msra.mxu0 0.0
    %221 = vmatprep.subr.mxu0 0.0
    %222 = vmatpush1.msra.mxu0 0.0
    %223 = vmatprep.subr.mxu0 0.0
    %224 = vmatpush1.msra.mxu0 %v193
    %225 = vmatprep.subr.mxu0 0.0
    %226 = vmatpush1.msra.mxu0 %v181
    %227 = vmatprep.subr.mxu0 0.0
    %228 = vmatpush2.msra.mxu0 0.0
    %229 = vmatprep.subr.mxu0 0.0
    %230 = vmatpush2.msra.mxu0 0.0
    %231 = vmatprep.subr.mxu0 0.0
    %232 = vmatpush2.msra.mxu0 0.0
    %233 = vmatprep.subr.mxu0 0.0
    %234 = vmatpush2.msra.mxu0 0.0
    %235 = vmatprep.subr.mxu0 0.0
    %236 = vmatpush2.msra.mxu0 0.0
    %237 = vmatprep.subr.mxu0 0.0
    %238 = vmatpush2.msra.mxu0 0.0
    %239 = vmatprep.subr.mxu0 0.0
    %240 = vmatpush2.msra.mxu0 0.0
    %241 = vmatprep.subr.mxu0 0.0
    %242 = vmatpush2.msra.mxu0 0.0
    %243 = vmatprep.subr.mxu0 0.0
    %244 = vmatpush2.msra.mxu0 0.0
    %245 = vmatprep.subr.mxu0 0.0
    %246 = vmatpush2.msra.mxu0 0.0
    %247 = vmatprep.subr.mxu0 0.0
    %248 = vmatpush2.msra.mxu0 0.0
    %249 = vmatprep.subr.mxu0 0.0
    %250 = vmatpush2.msra.mxu0 0.0
    %251 = vmatprep.subr.mxu0 0.0
    %252 = vmatpush2.msra.mxu0 0.0
    %253 = vmatprep.subr.mxu0 0.0
    %254 = vmatpush2.msra.mxu0 0.0
    %255 = vmatprep.subr.mxu0 0.0
    %256 = vmatpush2.msra.mxu0 0.0
    %257 = vmatprep.subr.mxu0 0.0
    %258 = vmatpush2.msra.mxu0 0.0
    %259 = vmatprep.mubr.f32.mxu0 0.0
    %260 = vmatmul.mubr.f32.gmra.mxu0 %v189
    %v261 = vpop.f32.mrf.mxu0
    %v262 = vadd.f32 0.0, %v261
    %v263 = vpop.f32.mrf.mxu0
    %264 = vdwg.mxu0
    %v265 = vsub.f32 %v44, %v262
    %v266 = vmul.f32 %v265, %v265
    %v267 = vsel %vm183, %v266, 0.0
    %268 = vadd.xlane.f32.xlu0 %v267
    %v269 = vpop.xlane.xlu0 %268
    %v270 = vrsqrt.pop %v269
    %v271 = vmul.f32 %v269, %v270
    %vm272 = vcmp.eq.f32.partialorder %v269, inf
    %v273 = vsel %vm272, %v269, %v271
    %vm274 = vcmp.eq.f32.partialorder %v269, 0.0
    %v275 = vand.u32 %v269, 2147483648
    %v276 = vsel %vm274, %v275, %v273
    %v277 = vmul.f32 %v60, %v276
    %v278 = vsel %vm187, %v277, -inf
    %v279 = vrot.slane %v278, 4
    %v280 = vmax.f32 %v278, %v279
    %v281 = vrot.slane %v280, 2
    %v282 = vmax.f32 %v280, %v281
    %v283 = vrot.slane %v282, 1
    %v284 = vmax.f32 %v282, %v283
    %v285 = vcvt.s32.f32 %v54
    %vm286 = vcmp.gt.f32.partialorder %v284, 0.0
    %v287 = vsel %vm286, %v285, 10.0
    %v288 = vsel %vm187, %v287, inf
    %289 = vmin.xlane.f32.xlu0 %v288
    %v290 = vpop.xlane.xlu0 %289
    %s291 = vtos %v290
    %v292 = vstv %s291
    %vm293 = vcmp.eq.f32.partialorder %v285, %v292
    %v294 = vsel %vm293, %v284, 0.0
    %vm295 = vcmask 73728
    %v296 = vsel %vm295, %v294, 0.0
    %297 = vadd.xlane.f32.xlu0 %v296
    %v298 = vpop.xlane.xlu0 %297
    %v299 = vrot.slane %v298, 4
    %v300 = vadd.f32 %v298, %v299
    %v301 = vrot.slane %v300, 2
    %v302 = vadd.f32 %v300, %v301
    %v303 = vrot.slane %v302, 1
    %v304 = vadd.f32 %v302, %v303
    %s305 = vtos %v304
    %v306 = vstv %s305
    %vm307 = vcmp.gt.f32.partialorder %v306, 0.0
    %v308 = vsel %vm307, %v306, 1.0
    %v309 = vrcp.pop %v308
    %v310 = vmul.f32 %v284, %v309
    %v311 = vmin.f32 %v310, 1.0
    %vm312 = vcmp.gt.f32.partialorder %v311, 0.0
    %v313 = vmax.f32 %v311, 1e-30
    %v314 = vlog2.pop %v313
    %v315 = vmul.f32 %v314, 0.6931472
    %v316 = vmul.f32 %v315, 0.09
    %v317 = vmul.f32 %v316, 1.442695
    %v318 = vpow.pop %v317
    %v319 = vsel %vm312, %v318, 0.0
    %v321 = vsel %vm183, %v44, 0
    %323 = vmatprep.subr.mxu0 0.0
    %324 = vmatpush1.xpose.msra.mxu0 0.0
    %325 = vmatprep.subr.mxu0 0.0
    %326 = vmatpush1.xpose.msra.mxu0 0.0
    %327 = vmatprep.subr.mxu0 0.0
    %328 = vmatpush1.xpose.msra.mxu0 0.0
    %329 = vmatprep.subr.mxu0 0.0
    %330 = vmatpush1.xpose.msra.mxu0 0.0
    %331 = vmatprep.subr.mxu0 0.0
    %332 = vmatpush1.xpose.msra.mxu0 0.0
    %333 = vmatprep.subr.mxu0 0.0
    %334 = vmatpush1.xpose.msra.mxu0 0.0
    %335 = vmatprep.subr.mxu0 0.0
    %336 = vmatpush1.xpose.msra.mxu0 0.0
    %337 = vmatprep.subr.mxu0 0.0
    %338 = vmatpush1.xpose.msra.mxu0 0.0
    %339 = vmatprep.subr.mxu0 0.0
    %340 = vmatpush1.xpose.msra.mxu0 0.0
    %341 = vmatprep.subr.mxu0 0.0
    %342 = vmatpush1.xpose.msra.mxu0 0.0
    %343 = vmatprep.subr.mxu0 0.0
    %344 = vmatpush1.xpose.msra.mxu0 0.0
    %345 = vmatprep.subr.mxu0 0.0
    %346 = vmatpush1.xpose.msra.mxu0 0.0
    %347 = vmatprep.subr.mxu0 0.0
    %348 = vmatpush1.xpose.msra.mxu0 0.0
    %349 = vmatprep.subr.mxu0 0.0
    %350 = vmatpush1.xpose.msra.mxu0 0.0
    %351 = vmatprep.subr.mxu0 0.0
    %352 = vmatpush1.xpose.msra.mxu0 0.0
    %353 = vmatprep.subr.mxu0 0.0
    %354 = vmatpush1.xpose.msra.mxu0 %v321
    %355 = vmatprep.subr.mxu0 0.0
    %356 = vmatpush2.xpose.msra.mxu0 0.0
    %357 = vmatprep.subr.mxu0 0.0
    %358 = vmatpush2.xpose.msra.mxu0 0.0
    %359 = vmatprep.subr.mxu0 0.0
    %360 = vmatpush2.xpose.msra.mxu0 0.0
    %361 = vmatprep.subr.mxu0 0.0
    %362 = vmatpush2.xpose.msra.mxu0 0.0
    %363 = vmatprep.subr.mxu0 0.0
    %364 = vmatpush2.xpose.msra.mxu0 0.0
    %365 = vmatprep.subr.mxu0 0.0
    %366 = vmatpush2.xpose.msra.mxu0 0.0
    %367 = vmatprep.subr.mxu0 0.0
    %368 = vmatpush2.xpose.msra.mxu0 0.0
    %369 = vmatprep.subr.mxu0 0.0
    %370 = vmatpush2.xpose.msra.mxu0 0.0
    %371 = vmatprep.subr.mxu0 0.0
    %372 = vmatpush2.xpose.msra.mxu0 0.0
    %373 = vmatprep.subr.mxu0 0.0
    %374 = vmatpush2.xpose.msra.mxu0 0.0
    %375 = vmatprep.subr.mxu0 0.0
    %376 = vmatpush2.xpose.msra.mxu0 0.0
    %377 = vmatprep.subr.mxu0 0.0
    %378 = vmatpush2.xpose.msra.mxu0 0.0
    %379 = vmatprep.subr.mxu0 0.0
    %380 = vmatpush2.xpose.msra.mxu0 0.0
    %381 = vmatprep.subr.mxu0 0.0
    %382 = vmatpush2.xpose.msra.mxu0 0.0
    %383 = vmatprep.subr.mxu0 0.0
    %384 = vmatpush2.xpose.msra.mxu0 0.0
    %385 = vmatprep.subr.mxu0 0.0
    %386 = vmatpush2.xpose.msra.mxu0 0.0
    %387 = vmatprep.mubr.f32.mxu0 0.0
    %388 = vmatmul.mubr.f32.gmra.mxu0 %v321
    %v389 = vpop.f32.mrf.mxu0
    %v390 = vadd.f32 0.0, %v389
    %v391 = vpop.f32.mrf.mxu0
    %392 = vdwg.mxu0
    %v393 = vmul.f32 %v44, %v44
    %v394 = vsel %vm183, %v393, 0.0
    %395 = vadd.xlane.f32.xlu0 %v394
    %v396 = vpop.xlane.xlu0 %395
    %397 = vxpose.xlu0.b32.start [1/16] %v396, 128
    %398 = vxpose.xlu0.b32.cont [2/16] 0.0, 128
    %399 = vxpose.xlu0.b32.cont [3/16] 0.0, 128
    %400 = vxpose.xlu0.b32.cont [4/16] 0.0, 128
    %401 = vxpose.xlu0.b32.cont [5/16] 0.0, 128
    %402 = vxpose.xlu0.b32.cont [6/16] 0.0, 128
    %403 = vxpose.xlu0.b32.cont [7/16] 0.0, 128
    %404 = vxpose.xlu0.b32.cont [8/16] 0.0, 128
    %405 = vxpose.xlu0.b32.cont [9/16] 0.0, 128
    %406 = vxpose.xlu0.b32.cont [10/16] 0.0, 128
    %407 = vxpose.xlu0.b32.cont [11/16] 0.0, 128
    %408 = vxpose.xlu0.b32.cont [12/16] 0.0, 128
    %409 = vxpose.xlu0.b32.cont [13/16] 0.0, 128
    %410 = vxpose.xlu0.b32.cont [14/16] 0.0, 128
    %411 = vxpose.xlu0.b32.cont [15/16] 0.0, 128
    %412 = vxpose.xlu0.b32.end [16/16] 0.0, 128
    %v413 = vpop.trf.xlu0
    %v414 = vpop.trf.xlu0
    %v415 = vpop.trf.xlu0
    %v416 = vpop.trf.xlu0
    %v417 = vpop.trf.xlu0
    %v418 = vpop.trf.xlu0
    %v419 = vpop.trf.xlu0
    %v420 = vpop.trf.xlu0
    %v421 = vpop.trf.xlu0
    %v422 = vpop.trf.xlu0
    %v423 = vpop.trf.xlu0
    %v424 = vpop.trf.xlu0
    %v425 = vpop.trf.xlu0
    %v426 = vpop.trf.xlu0
    %v427 = vpop.trf.xlu0
    %v428 = vpop.trf.xlu0
    %v429 = vlaneseq
    %v430 = vshrl.u32 %v429, 7
    %v431 = vsub.s32 0, %v430
    %v432 = vrot.slane %v413, %v431
    %v433 = vadd.f32 %v396, %v432
    %v434 = vmul.f32 %v390, 2.0
    %v435 = vsub.f32 %v433, %v434
    %v436 = vmax.f32 %v435, 0.0
    %v438 = vcombine.high %v436, %v436
    %v440 = vunpack.c.l.s4 1966171168
    %v441 = vunpack.c.0.s8 %v440
    %v442 = vlaneseq
    %v443 = vshrl.u32 %v442, 7
    %v444 = vsub.s32 %v441, %v443
    %v445 = vrot.slane %v436, %v444
    %v447 = vunpack.c.l.s4 1966171168
    %v448 = vunpack.c.0.s8 %v447
    %v449 = vlaneseq
    %v450 = vshrl.u32 %v449, 7
    %v451 = vsub.s32 %v448, %v450
    %v452 = vrot.slane %v438, %v451
    %v453 = vcombine.high %v445, %v445
    %v454 = vcombine.high %v452, %v452
    %v456 = vunpack.c.l.s4 1966171168
    %v457 = vunpack.c.0.s8 %v456
    %v458 = vlaneseq
    %v459 = vshrl.u32 %v458, 7
    %v460 = vsub.s32 %v457, %v459
    %v461 = vrot.slane %v445, %v460
    %v463 = vunpack.c.l.s4 1966171168
    %v464 = vunpack.c.0.s8 %v463
    %v465 = vlaneseq
    %v466 = vshrl.u32 %v465, 7
    %v467 = vsub.s32 %v464, %v466
    %v468 = vrot.slane %v452, %v467
    %v470 = vunpack.c.l.s4 1966171168
    %v471 = vunpack.c.0.s8 %v470
    %v472 = vlaneseq
    %v473 = vshrl.u32 %v472, 7
    %v474 = vsub.s32 %v471, %v473
    %v475 = vrot.slane %v453, %v474
    %v477 = vunpack.c.l.s4 1966171168
    %v478 = vunpack.c.0.s8 %v477
    %v479 = vlaneseq
    %v480 = vshrl.u32 %v479, 7
    %v481 = vsub.s32 %v478, %v480
    %v482 = vrot.slane %v454, %v481
    %v483 = vcombine.high %v461, %v461
    %v484 = vcombine.high %v468, %v468
    %v485 = vcombine.high %v475, %v475
    %v486 = vcombine.high %v482, %v482
    %v487 = vlaneseq
    %v488 = vshrl.u32 %v487, 7
    %v489 = vsub.s32 0, %v488
    %v490 = vrot.slane %v461, %v489
    %v491 = vlaneseq
    %v492 = vshrl.u32 %v491, 7
    %v493 = vsub.s32 0, %v492
    %v494 = vrot.slane %v475, %v493
    %v495 = vlaneseq
    %v496 = vshrl.u32 %v495, 7
    %v497 = vsub.s32 0, %v496
    %v498 = vrot.slane %v483, %v497
    %v499 = vlaneseq
    %v500 = vshrl.u32 %v499, 7
    %v501 = vsub.s32 0, %v500
    %v502 = vrot.slane %v485, %v501
    %v503 = vlaneseq
    %v504 = vshrl.u32 %v503, 7
    %v505 = vsub.s32 0, %v504
    %v506 = vrot.slane %v468, %v505
    %v507 = vlaneseq
    %v508 = vshrl.u32 %v507, 7
    %v509 = vsub.s32 0, %v508
    %v510 = vrot.slane %v482, %v509
    %v511 = vlaneseq
    %v512 = vshrl.u32 %v511, 7
    %v513 = vsub.s32 0, %v512
    %v514 = vrot.slane %v484, %v513
    %v515 = vlaneseq
    %v516 = vshrl.u32 %v515, 7
    %v517 = vsub.s32 0, %v516
    %v518 = vrot.slane %v486, %v517
    %v527 = vadd.f32 %v490, %v436
    %v528 = vadd.f32 %v494, %v436
    %v529 = vadd.f32 %v498, %v436
    %v530 = vadd.f32 %v502, %v436
    %v531 = vadd.f32 %v506, %v436
    %v532 = vadd.f32 %v510, %v436
    %v533 = vadd.f32 %v514, %v436
    %v534 = vadd.f32 %v518, %v436
    %v535 = vsub.f32 %v527, %v436
    %v536 = vsub.f32 %v528, %v436
    %v537 = vsub.f32 %v529, %v436
    %v538 = vsub.f32 %v530, %v436
    %v539 = vsub.f32 %v531, %v436
    %v540 = vsub.f32 %v532, %v436
    %v541 = vsub.f32 %v533, %v436
    %v542 = vsub.f32 %v534, %v436
    %v543 = vsel %vm74, %v535, inf
    %544 = vmin.xlane.f32.xlu0 %v543
    %v545 = vpop.xlane.xlu0 %544
    %v546 = vsel %vm74, %v536, inf
    %547 = vmin.xlane.f32.xlu0 %v546
    %v548 = vpop.xlane.xlu0 %547
    %v549 = vsel %vm74, %v537, inf
    %550 = vmin.xlane.f32.xlu0 %v549
    %v551 = vpop.xlane.xlu0 %550
    %v552 = vsel %vm74, %v538, inf
    %553 = vmin.xlane.f32.xlu0 %v552
    %v554 = vpop.xlane.xlu0 %553
    %v555 = vsel %vm74, %v539, inf
    %556 = vmin.xlane.f32.xlu0 %v555
    %v557 = vpop.xlane.xlu0 %556
    %v558 = vsel %vm74, %v540, inf
    %559 = vmin.xlane.f32.xlu0 %v558
    %v560 = vpop.xlane.xlu0 %559
    %v561 = vsel %vm74, %v541, inf
    %562 = vmin.xlane.f32.xlu0 %v561
    %v563 = vpop.xlane.xlu0 %562
    %v564 = vsel %vm74, %v542, inf
    %565 = vmin.xlane.f32.xlu0 %v564
    %v566 = vpop.xlane.xlu0 %565
    %vm567 = vcmp.ge.f32.partialorder %v545, 0.0
    %vm568 = vcmp.ge.f32.partialorder %v548, 0.0
    %vm569 = vcmp.ge.f32.partialorder %v551, 0.0
    %vm570 = vcmp.ge.f32.partialorder %v554, 0.0
    %vm571 = vcmp.ge.f32.partialorder %v557, 0.0
    %vm572 = vcmp.ge.f32.partialorder %v560, 0.0
    %vm573 = vcmp.ge.f32.partialorder %v563, 0.0
    %vm574 = vcmp.ge.f32.partialorder %v566, 0.0
    %v575 = vsel %vm567, 1, 0
    %v576 = vsel %vm568, 1, 0
    %v577 = vsel %vm569, 1, 0
    %v578 = vsel %vm570, 1, 0
    %v579 = vsel %vm571, 1, 0
    %v580 = vsel %vm572, 1, 0
    %v581 = vsel %vm573, 1, 0
    %v582 = vsel %vm574, 1, 0
    %v583 = vcvt.s32.f32 %v575
    %v584 = vcvt.s32.f32 %v576
    %v585 = vcvt.s32.f32 %v577
    %v586 = vcvt.s32.f32 %v578
    %v587 = vcvt.s32.f32 %v579
    %v588 = vcvt.s32.f32 %v580
    %v589 = vcvt.s32.f32 %v581
    %v590 = vcvt.s32.f32 %v582
    %vm591 = vcmp.ne.s32.totalorder %v62, %v54
    %v592 = vsel %vm591, 1, 0
    %v593 = vcvt.s32.f32 %v592
    %vm594 = vcmp.ne.s32.totalorder %v57, %v67
    %v595 = vsel %vm594, 1, 0
    %v596 = vcvt.s32.f32 %v595
    %v605 = vlaneseq
    %v606 = vshrl.u32 %v605, 7
    %v607 = vsub.s32 %v54, %v606
    %v608 = vrot.slane %v583, %v607
    %v609 = vlaneseq
    %v610 = vshrl.u32 %v609, 7
    %v611 = vsub.s32 %v54, %v610
    %v612 = vrot.slane %v584, %v611
    %v613 = vlaneseq
    %v614 = vshrl.u32 %v613, 7
    %v615 = vsub.s32 %v54, %v614
    %v616 = vrot.slane %v585, %v615
    %v617 = vlaneseq
    %v618 = vshrl.u32 %v617, 7
    %v619 = vsub.s32 %v54, %v618
    %v620 = vrot.slane %v586, %v619
    %v621 = vlaneseq
    %v622 = vshrl.u32 %v621, 7
    %v623 = vsub.s32 %v54, %v622
    %v624 = vrot.slane %v587, %v623
    %v625 = vlaneseq
    %v626 = vshrl.u32 %v625, 7
    %v627 = vsub.s32 %v54, %v626
    %v628 = vrot.slane %v588, %v627
    %v629 = vlaneseq
    %v630 = vshrl.u32 %v629, 7
    %v631 = vsub.s32 %v54, %v630
    %v632 = vrot.slane %v589, %v631
    %v633 = vlaneseq
    %v634 = vshrl.u32 %v633, 7
    %v635 = vsub.s32 %v54, %v634
    %v636 = vrot.slane %v590, %v635
    %vm637 = vcmask 1041409
    %v638 = vsel %vm637, %v612, %v608
    %vm639 = vcmask 1042434
    %v640 = vsel %vm639, %v616, %v638
    %vm641 = vcmask 1043459
    %v642 = vsel %vm641, %v620, %v640
    %vm643 = vcmask 1044484
    %v644 = vsel %vm643, %v624, %v642
    %vm645 = vcmask 1045509
    %v646 = vsel %vm645, %v628, %v644
    %vm647 = vcmask 1046534
    %v648 = vsel %vm647, %v632, %v646
    %vm649 = vcmask 1047559
    %v650 = vsel %vm649, %v636, %v648
    %v652 = vmul.f32 %v596, %v650
    %v653 = vmul.f32 %v652, %v593
    %v654 = vmul.f32 %v436, -0.033333335
    %v655 = vmul.f32 %v654, 1.442695
    %v656 = vpow.pop %v655
    %v657 = vsel %vm74, %v653, 0.0
    %658 = vadd.xlane.f32.xlu0 %v657
    %v659 = vpop.xlane.xlu0 %658
    %v660 = vrot.slane %v659, 4
    %v661 = vadd.f32 %v659, %v660
    %v662 = vrot.slane %v661, 2
    %v663 = vadd.f32 %v661, %v662
    %v664 = vrot.slane %v663, 1
    %v665 = vadd.f32 %v663, %v664
    %s666 = vtos %v665
    %v667 = vstv %s666
    %v668 = vmax.f32 %v667, 1.0
    %v670 = vsel %vm191, %v48, 0
    %672 = vmatprep.subr.mxu0 0.0
    %673 = vmatpush1.msra.mxu0 0.0
    %674 = vmatprep.subr.mxu0 0.0
    %675 = vmatpush1.msra.mxu0 0.0
    %676 = vmatprep.subr.mxu0 0.0
    %677 = vmatpush1.msra.mxu0 0.0
    %678 = vmatprep.subr.mxu0 0.0
    %679 = vmatpush1.msra.mxu0 0.0
    %680 = vmatprep.subr.mxu0 0.0
    %681 = vmatpush1.msra.mxu0 0.0
    %682 = vmatprep.subr.mxu0 0.0
    %683 = vmatpush1.msra.mxu0 0.0
    %684 = vmatprep.subr.mxu0 0.0
    %685 = vmatpush1.msra.mxu0 0.0
    %686 = vmatprep.subr.mxu0 0.0
    %687 = vmatpush1.msra.mxu0 0.0
    %688 = vmatprep.subr.mxu0 0.0
    %689 = vmatpush1.msra.mxu0 0.0
    %690 = vmatprep.subr.mxu0 0.0
    %691 = vmatpush1.msra.mxu0 0.0
    %692 = vmatprep.subr.mxu0 0.0
    %693 = vmatpush1.msra.mxu0 0.0
    %694 = vmatprep.subr.mxu0 0.0
    %695 = vmatpush1.msra.mxu0 0.0
    %696 = vmatprep.subr.mxu0 0.0
    %697 = vmatpush1.msra.mxu0 0.0
    %698 = vmatprep.subr.mxu0 0.0
    %699 = vmatpush1.msra.mxu0 0.0
    %700 = vmatprep.subr.mxu0 0.0
    %701 = vmatpush1.msra.mxu0 %v670
    %702 = vmatprep.subr.mxu0 0.0
    %703 = vmatpush1.msra.mxu0 %v47
    %704 = vmatprep.subr.mxu0 0.0
    %705 = vmatpush2.msra.mxu0 0.0
    %706 = vmatprep.subr.mxu0 0.0
    %707 = vmatpush2.msra.mxu0 0.0
    %708 = vmatprep.subr.mxu0 0.0
    %709 = vmatpush2.msra.mxu0 0.0
    %710 = vmatprep.subr.mxu0 0.0
    %711 = vmatpush2.msra.mxu0 0.0
    %712 = vmatprep.subr.mxu0 0.0
    %713 = vmatpush2.msra.mxu0 0.0
    %714 = vmatprep.subr.mxu0 0.0
    %715 = vmatpush2.msra.mxu0 0.0
    %716 = vmatprep.subr.mxu0 0.0
    %717 = vmatpush2.msra.mxu0 0.0
    %718 = vmatprep.subr.mxu0 0.0
    %719 = vmatpush2.msra.mxu0 0.0
    %720 = vmatprep.subr.mxu0 0.0
    %721 = vmatpush2.msra.mxu0 0.0
    %722 = vmatprep.subr.mxu0 0.0
    %723 = vmatpush2.msra.mxu0 0.0
    %724 = vmatprep.subr.mxu0 0.0
    %725 = vmatpush2.msra.mxu0 0.0
    %726 = vmatprep.subr.mxu0 0.0
    %727 = vmatpush2.msra.mxu0 0.0
    %728 = vmatprep.subr.mxu0 0.0
    %729 = vmatpush2.msra.mxu0 0.0
    %730 = vmatprep.subr.mxu0 0.0
    %731 = vmatpush2.msra.mxu0 0.0
    %732 = vmatprep.subr.mxu0 0.0
    %733 = vmatpush2.msra.mxu0 0.0
    %734 = vmatprep.subr.mxu0 0.0
    %735 = vmatpush2.msra.mxu0 0.0
    %736 = vmatprep.mubr.f32.mxu0 0.0
    %737 = vmatmul.mubr.f32.gmra.mxu0 %v189
    %v738 = vpop.f32.mrf.mxu0
    %v739 = vadd.f32 0.0, %v738
    %v740 = vpop.f32.mrf.mxu0
    %741 = vdwg.mxu0
    %v742 = vsub.f32 %v44, %v739
    %v743 = vmul.f32 %v742, %v742
    %v744 = vsel %vm183, %v743, 0.0
    %745 = vadd.xlane.f32.xlu0 %v744
    %v746 = vpop.xlane.xlu0 %745
    %v747 = vmul.f32 %v746, -0.033333335
    %v748 = vmul.f32 %v747, 1.442695
    %v749 = vpow.pop %v748
    %750 = vxpose.xlu0.b32.start [1/16] %v749, 128
    %751 = vxpose.xlu0.b32.cont [2/16] 0.0, 128
    %752 = vxpose.xlu0.b32.cont [3/16] 0.0, 128
    %753 = vxpose.xlu0.b32.cont [4/16] 0.0, 128
    %754 = vxpose.xlu0.b32.cont [5/16] 0.0, 128
    %755 = vxpose.xlu0.b32.cont [6/16] 0.0, 128
    %756 = vxpose.xlu0.b32.cont [7/16] 0.0, 128
    %757 = vxpose.xlu0.b32.cont [8/16] 0.0, 128
    %758 = vxpose.xlu0.b32.cont [9/16] 0.0, 128
    %759 = vxpose.xlu0.b32.cont [10/16] 0.0, 128
    %760 = vxpose.xlu0.b32.cont [11/16] 0.0, 128
    %761 = vxpose.xlu0.b32.cont [12/16] 0.0, 128
    %762 = vxpose.xlu0.b32.cont [13/16] 0.0, 128
    %763 = vxpose.xlu0.b32.cont [14/16] 0.0, 128
    %764 = vxpose.xlu0.b32.cont [15/16] 0.0, 128
    %765 = vxpose.xlu0.b32.end [16/16] 0.0, 128
    %v766 = vpop.trf.xlu0
    %v767 = vpop.trf.xlu0
    %v768 = vpop.trf.xlu0
    %v769 = vpop.trf.xlu0
    %v770 = vpop.trf.xlu0
    %v771 = vpop.trf.xlu0
    %v772 = vpop.trf.xlu0
    %v773 = vpop.trf.xlu0
    %v774 = vpop.trf.xlu0
    %v775 = vpop.trf.xlu0
    %v776 = vpop.trf.xlu0
    %v777 = vpop.trf.xlu0
    %v778 = vpop.trf.xlu0
    %v779 = vpop.trf.xlu0
    %v780 = vpop.trf.xlu0
    %v781 = vpop.trf.xlu0
    %v782 = vlaneseq
    %v783 = vshrl.u32 %v782, 7
    %v784 = vsub.s32 0, %v783
    %v785 = vrot.slane %v766, %v784
    %v786 = vsub.f32 %v656, %v785
    %v787 = vadd.f32 %v786, 0.5
    %v788 = vmul.f32 %v653, %v787
    %v789 = vmax.f32 %v788, 0.0
    %v791 = vlaneseq
    %v792 = vshrl.u32 %v791, 7
    %v793 = vsub.s32 0, %v792
    %v794 = vrot.slane %v50, %v793
    %v796 = vmul.f32 %v60, %v794
    %v797 = vsel %vm187, %v796, 0.0
    %798 = vadd.xlane.f32.xlu0 %v797
    %v799 = vpop.xlane.xlu0 %798
    %800 = vxpose.xlu0.b32.start [1/16] %v799, 128
    %801 = vxpose.xlu0.b32.cont [2/16] 0.0, 128
    %802 = vxpose.xlu0.b32.cont [3/16] 0.0, 128
    %803 = vxpose.xlu0.b32.cont [4/16] 0.0, 128
    %804 = vxpose.xlu0.b32.cont [5/16] 0.0, 128
    %805 = vxpose.xlu0.b32.cont [6/16] 0.0, 128
    %806 = vxpose.xlu0.b32.cont [7/16] 0.0, 128
    %807 = vxpose.xlu0.b32.cont [8/16] 0.0, 128
    %808 = vxpose.xlu0.b32.cont [9/16] 0.0, 128
    %809 = vxpose.xlu0.b32.cont [10/16] 0.0, 128
    %810 = vxpose.xlu0.b32.cont [11/16] 0.0, 128
    %811 = vxpose.xlu0.b32.cont [12/16] 0.0, 128
    %812 = vxpose.xlu0.b32.cont [13/16] 0.0, 128
    %813 = vxpose.xlu0.b32.cont [14/16] 0.0, 128
    %814 = vxpose.xlu0.b32.cont [15/16] 0.0, 128
    %815 = vxpose.xlu0.b32.end [16/16] 0.0, 128
    %v816 = vpop.trf.xlu0
    %v817 = vpop.trf.xlu0
    %v818 = vpop.trf.xlu0
    %v819 = vpop.trf.xlu0
    %v820 = vpop.trf.xlu0
    %v821 = vpop.trf.xlu0
    %v822 = vpop.trf.xlu0
    %v823 = vpop.trf.xlu0
    %v824 = vpop.trf.xlu0
    %v825 = vpop.trf.xlu0
    %v826 = vpop.trf.xlu0
    %v827 = vpop.trf.xlu0
    %v828 = vpop.trf.xlu0
    %v829 = vpop.trf.xlu0
    %v830 = vpop.trf.xlu0
    %v831 = vpop.trf.xlu0
    %v832 = vrcp.pop %v816
    %v833 = vlaneseq
    %v834 = vshrl.u32 %v833, 7
    %v835 = vsub.s32 0, %v834
    %v836 = vrot.slane %v832, %v835
    %v837 = vmul.f32 %v789, %v836
    %v838 = vsel %vm74, %v837, 0.0
    %839 = vadd.xlane.f32.xlu0 %v838
    %v840 = vpop.xlane.xlu0 %839
    %v841 = vrot.slane %v840, 4
    %v842 = vadd.f32 %v840, %v841
    %v843 = vrot.slane %v842, 2
    %v844 = vadd.f32 %v842, %v843
    %v845 = vrot.slane %v844, 1
    %v846 = vadd.f32 %v844, %v845
    %s847 = vtos %v846
    %v848 = vstv %s847
    %v849 = vmul.f32 %v49, %v319
    %v850 = vsel %vm187, %v849, -inf
    %851 = vmax.xlane.f32.xlu0 %v850
    %v852 = vpop.xlane.xlu0 %851
    %v853 = vsub.f32 %v849, %v852
    %v854 = vmul.f32 %v853, 1.442695
    %v855 = vpow.pop %v854
    %v856 = vsel %vm187, %v855, 0.0
    %857 = vadd.xlane.f32.xlu0 %v856
    %v858 = vpop.xlane.xlu0 %857
    %v859 = vlog2.pop %v858
    %v860 = vmul.f32 %v859, 0.6931472
    %v861 = vadd.f32 %v852, %v860
    %v862 = vmul.f32 %v60, %v849
    %v863 = vsel %vm187, %v862, 0.0
    %864 = vadd.xlane.f32.xlu0 %v863
    %v865 = vpop.xlane.xlu0 %864
    %v866 = vsub.f32 %v861, %v865
    %vm867 = vcmask 7168
    %v868 = vsel %vm867, %v866, 0.0
    %869 = vadd.xlane.f32.xlu0 %v868
    %v870 = vpop.xlane.xlu0 %869
    %v871 = vrot.slane %v870, 4
    %v872 = vadd.f32 %v870, %v871
    %v873 = vrot.slane %v872, 2
    %v874 = vadd.f32 %v872, %v873
    %v875 = vrot.slane %v874, 1
    %v876 = vadd.f32 %v874, %v875
    %s877 = vtos %v876
    %v878 = vstv %s877
    %v879 = vmul.f32 %v878, 0.125
    %v880 = vmul.f32 %v848, 0.91
    %v881 = vrcp.pop %v668
    %v882 = vmul.f32 %v880, %v881
    %v883 = vadd.f32 %v879, %v882
    %s884 = vtos %v883
    %s885 = scalar_lea.smem [#allocation7], 0
    %886 = sst [smem:[%s885]] %s884
    // Predicated region
    $region34: #{tpu_custom_call.1} parent=1 // pred_check
      _
    $region35: #{tpu_custom_call.1} parent=1 // pred_check_branch
      %888 = sbr.rel (0) target = $region37
    $region36: #{tpu_custom_call.1} parent=1 // pred_region
      %s890 = ssub.s32 256, 256
      %891 = vsyncadd [#allocation4], %s890
      %s892 = sshll.u32 [#allocation6], 4
      %s893 = int_to_ptr.vmem [resolvable:$true] %s892
      %898 = dma.vmem_to_hbm [thread:$0]  %s893, 256, %s7, [#allocation4], 128, 128, 8
    $region37: #{tpu_custom_call.1} parent=1 // pred_fallthru
      _
    // Predicated region
    $region38: #{tpu_custom_call.1} parent=1 // pred_check
      _
    $region39: #{tpu_custom_call.1} parent=1 // pred_check_branch
      %900 = sbr.rel (0) target = $region41
    $region40: #{tpu_custom_call.1} parent=1 // pred_region
      %s902 = ssub.s32 16, 16
      %903 = vsyncadd [#allocation5], %s902
      %906 = dma.smem_to_hbm [#allocation7], 16, %s8, [#allocation5]
    $region41: #{tpu_custom_call.1} parent=1 // pred_fallthru
      _
    // Predicated region
    $region42: #{tpu_custom_call.1} parent=1 // pred_check
      _
    $region43: #{tpu_custom_call.1} parent=1 // pred_check_branch
      %908 = sbr.rel (0) target = $region45
    $region44: #{tpu_custom_call.1} parent=1 // pred_region
      %909 = dma.done [#allocation4], 256
    $region45: #{tpu_custom_call.1} parent=1 // pred_fallthru
      _
    // Predicated region
    $region46: #{tpu_custom_call.1} parent=1 // pred_check
      _
    $region47: #{tpu_custom_call.1} parent=1 // pred_check_branch
      %911 = sbr.rel (0) target = $region49
    $region48: #{tpu_custom_call.1} parent=1 // pred_region
      %912 = dma.done [#allocation5], 16
    $region49: #{tpu_custom_call.1} parent=1 // pred_fallthru
      _
    %913 = sfence
    %914 = vsyncpa [#allocation3], 1
    %915 = vsyncpa [#allocation4], 1
    %916 = vsyncpa [#allocation5], 1

</llo_original>
